<compile_context>
chip_gen: v7x
topology: tpu7x:2x2x1
jax: 0.10.0
libtpu: 0.0.40
codegen_flags: <defaults>
</compile_context>

<pallas_src>
import functools

import jax
import jax.numpy as jnp
from jax.experimental import pallas as pl
from jax.experimental.pallas import tpu as pltpu


def _round_up(v, m):
    return (v + m - 1) // m * m


def _coupling_kernel(x_ref,
                     wf1_ref, bf1_ref, wf2_ref, bf2_ref,
                     wg1_ref, bg1_ref, wg2_ref, bg2_ref,
                     out_ref, *, n_sub, split_store):
    D = wf1_ref.shape[0]
    tm = x_ref.shape[0]
    sub = tm // n_sub

    w_dtype = wf1_ref.dtype
    # bias-add + GELU dtype: bf16 when the weights are bf16 (v6e/v7x VPU/EUP
    # have a bf16 path and the activation is cast to bf16 for the next matmul
    # anyway); f32 otherwise (v5e has no bf16 VPU/EUP path).
    act_dtype = jnp.float32 if w_dtype == jnp.float32 else w_dtype

    # Unrolled loop over independent row sub-tiles: sub-tile s+1's matmul
    # pushes can co-issue with sub-tile s's GELU / bias / residual work.
    for s in range(n_sub):
        rows = slice(s * sub, (s + 1) * sub)

        # In-kernel chunk (free when D % 128 == 0; tiny tiles fit one vreg row).
        x1 = x_ref[rows, :D]
        x2 = x_ref[rows, D:]
        x2_mm = x2 if x2.dtype == w_dtype else x2.astype(w_dtype)

        # F(X_2): Linear -> GELU -> Linear.  Native-dtype MXU operands,
        # f32 accumulation via preferred_element_type.
        h = jnp.dot(x2_mm, wf1_ref[...], preferred_element_type=jnp.float32)
        h = jax.nn.gelu(h.astype(act_dtype) + bf1_ref[...].astype(act_dtype),
                        approximate=True)
        f = jnp.dot(h.astype(w_dtype), wf2_ref[...],
                    preferred_element_type=jnp.float32)
        y1 = x1.astype(jnp.float32) + f + bf2_ref[...].astype(jnp.float32)

        # G(Y_1): Linear -> GELU -> Linear.
        h = jnp.dot(y1.astype(w_dtype), wg1_ref[...],
                    preferred_element_type=jnp.float32)
        h = jax.nn.gelu(h.astype(act_dtype) + bg1_ref[...].astype(act_dtype),
                        approximate=True)
        g = jnp.dot(h.astype(w_dtype), wg2_ref[...],
                    preferred_element_type=jnp.float32)
        y2 = x2.astype(jnp.float32) + g + bg2_ref[...].astype(jnp.float32)

        if split_store:
            # Two lane-dense half-stores (D % 128 == 0): no concatenated
            # (sub, 2D) f32 temporary.
            out_ref[rows, :D] = y1.astype(out_ref.dtype)
            out_ref[rows, D:] = y2.astype(out_ref.dtype)
        else:
            # Small / unaligned D: a single full-width store avoids a
            # lane-offset masked store at a non-128-aligned column.
            out_ref[rows, :] = jnp.concatenate([y1, y2], axis=-1).astype(out_ref.dtype)


@functools.partial(jax.jit, static_argnames=("tm",))
def coupling_block(x, params, *, tm=256):
    """x: [B, S, 2*D] -> [B, S, 2*D]."""
    B, S, C2 = x.shape
    D = C2 // 2
    M = B * S

    wf1, bf1, wf2, bf2, wg1, bg1, wg2, bg2 = params
    H = wf1.shape[1]

    x_flat = x.reshape(M, C2)
    itemsize = jnp.dtype(x.dtype).itemsize

    # dtype-aware sublane packing: f32 -> 8 rows/vreg, bf16 -> 16, int8/fp8 -> 32.
    row_align = 8 * max(1, 4 // itemsize)

    # Token tile: as large as requested, row-aligned, and capped at ~M/2 so the
    # "parallel" grid axis has >= 2 blocks (both v7x TensorCores get work).
    if M > row_align:
        tm_cap = _round_up(pl.cdiv(M, 2), row_align)
    else:
        tm_cap = _round_up(M, row_align)
    tm = max(row_align, min(_round_up(tm, row_align), tm_cap))

    # Ragged last block handled by Pallas masking -> no wrapper pad / slice.
    steps = pl.cdiv(M, tm)

    # Split each tile into 2 independent half-tiles when alignment allows.
    n_sub = 2 if (tm >= 2 * row_align and tm % (2 * row_align) == 0) else 1
    split_store = (D % 128 == 0)

    row_spec = pl.BlockSpec((tm, C2), lambda i: (i, 0))
    # Weights/biases: constant block index + single buffer -> fetched once,
    # resident in VMEM at half the default double-buffered footprint.
    full = lambda shape: pl.BlockSpec(shape, lambda i: (0, 0),
                                      pipeline_mode=pl.Buffered(1))

    weight_bytes = sum(int(p.size) * jnp.dtype(p.dtype).itemsize for p in params)
    Mp = steps * tm
    cost = pl.CostEstimate(
        flops=8 * Mp * D * H,                 # 4 matmuls, 2*M*D*H each
        transcendentals=2 * Mp * H,           # tanh-GELU per hidden activation
        bytes_accessed=2 * M * C2 * itemsize + weight_bytes,
    )

    # VMEM budget: single-buffered weights + double-buffered in/out activation
    # tiles + f32 intermediates, ~50% headroom, capped at v7x's 64 MiB/TC.
    act_tile_bytes = tm * C2 * itemsize
    inter_bytes = (tm // n_sub) * (H + C2) * 4 * 3
    footprint = weight_bytes + 4 * act_tile_bytes + inter_bytes
    vmem_limit = int(min(64 * (1 << 20), max(16 * (1 << 20), footprint * 3 // 2)))

    # TODO(synk): for very large D*H (weights not fitting single-buffered in
    # VMEM) add an inner reduction pipeline over H instead of shrinking tm.

    kernel = functools.partial(_coupling_kernel, n_sub=n_sub,
                               split_store=split_store)

    out_flat = pl.pallas_call(
        kernel,
        out_shape=jax.ShapeDtypeStruct((M, C2), x.dtype),
        grid_spec=pltpu.PrefetchScalarGridSpec(
            num_scalar_prefetch=0,
            grid=(steps,),
            in_specs=[row_spec,
                      full((D, H)), full((1, H)), full((H, D)), full((1, D)),
                      full((D, H)), full((1, H)), full((H, D)), full((1, D))],
            out_specs=row_spec,
        ),
        compiler_params=pltpu.CompilerParams(
            dimension_semantics=("parallel",),
            vmem_limit_bytes=vmem_limit),
        cost_estimate=cost,
    )(x_flat, wf1, bf1, wf2, bf2, wg1, bg1, wg2, bg2)

    return out_flat.reshape(B, S, C2)


def init_params(key, D, H, dtype=jnp.float32):
    # For best MXU throughput on v6e/v7x use dtype=jnp.bfloat16 (f32 accumulation
    # is preserved inside the kernel via preferred_element_type).
    ks = jax.random.split(key, 8)
    scale_in = 1.0 / jnp.sqrt(D)
    scale_hid = 1.0 / jnp.sqrt(H)
    wf1 = jax.random.normal(ks[0], (D, H), dtype) * scale_in
    bf1 = jax.random.normal(ks[1], (1, H), dtype) * 0.01
    wf2 = jax.random.normal(ks[2], (H, D), dtype) * scale_hid
    bf2 = jax.random.normal(ks[3], (1, D), dtype) * 0.01
    wg1 = jax.random.normal(ks[4], (D, H), dtype) * scale_in
    bg1 = jax.random.normal(ks[5], (1, H), dtype) * 0.01
    wg2 = jax.random.normal(ks[6], (H, D), dtype) * scale_hid
    bg2 = jax.random.normal(ks[7], (1, D), dtype) * 0.01
    return (wf1, bf1, wf2, bf2, wg1, bg1, wg2, bg2)


def coupling_block_ref(x, params):
    """Pure-JAX reference for validation (same tanh-GELU as the kernel)."""
    wf1, bf1, wf2, bf2, wg1, bg1, wg2, bg2 = params
    D = x.shape[-1] // 2
    x1, x2 = x[..., :D], x[..., D:]
    f = jnp.dot(jax.nn.gelu(jnp.dot(x2, wf1) + bf1, approximate=True), wf2) + bf2
    y1 = x1 + f
    g = jnp.dot(jax.nn.gelu(jnp.dot(y1, wg1) + bg1, approximate=True), wg2) + bg2
    y2 = x2 + g
    return jnp.concatenate([y1, y2], axis=-1)


if __name__ == "__main__":
    # TODO(synk): the reversible custom-autograd backward (activation
    # recomputation / release_saved_output hooks) has no forward-kernel
    # equivalent; only the forward pass is implemented here.
    key = jax.random.PRNGKey(0)
    B, S, D, H = 2, 8, 32, 64          # x: [2, 8, 64]  (2*D = 64 channels)
    kx, kp = jax.random.split(key)
    x = jax.random.normal(kx, (B, S, 2 * D), jnp.float32)
    params = init_params(kp, D, H)

    out = coupling_block(x, params)
    out = jax.block_until_ready(out)

    ref = coupling_block_ref(x, params)
    assert out.shape == (B, S, 2 * D)
    assert jnp.allclose(out, ref, atol=1e-4, rtol=1e-4), "mismatch vs reference"

    print("KERNEL_OK")
</pallas_src>

<mosaic_0001>
module attributes {stable_mosaic.version = 11 : i64} {
  func.func @_coupling_kernel(%arg0: i32, %arg1: memref<8x64xf32, #tpu.memory_space<vmem>>, %arg2: memref<32x64xf32, #tpu.memory_space<vmem>>, %arg3: memref<1x64xf32, #tpu.memory_space<vmem>>, %arg4: memref<64x32xf32, #tpu.memory_space<vmem>>, %arg5: memref<1x32xf32, #tpu.memory_space<vmem>>, %arg6: memref<32x64xf32, #tpu.memory_space<vmem>>, %arg7: memref<1x64xf32, #tpu.memory_space<vmem>>, %arg8: memref<64x32xf32, #tpu.memory_space<vmem>>, %arg9: memref<1x32xf32, #tpu.memory_space<vmem>>, %arg10: memref<8x64xf32, #tpu.memory_space<vmem>>) attributes {dimension_semantics = [#tpu.dimension_semantics<parallel>], iteration_bounds = array<i64: 2>, scalar_prefetch = 0 : i64, scratch_operands = 0 : i64, tpu.core_type = #tpu.core_type<tc>, window_params = [{transform_indices = @transform_0, window_bounds = array<i64: 8, 64>}, {pipeline_mode = #tpu.pipeline_mode<synchronous>, transform_indices = @transform_1, window_bounds = array<i64: 32, 64>}, {pipeline_mode = #tpu.pipeline_mode<synchronous>, transform_indices = @transform_2, window_bounds = array<i64: 1, 64>}, {pipeline_mode = #tpu.pipeline_mode<synchronous>, transform_indices = @transform_3, window_bounds = array<i64: 64, 32>}, {pipeline_mode = #tpu.pipeline_mode<synchronous>, transform_indices = @transform_4, window_bounds = array<i64: 1, 32>}, {pipeline_mode = #tpu.pipeline_mode<synchronous>, transform_indices = @transform_5, window_bounds = array<i64: 32, 64>}, {pipeline_mode = #tpu.pipeline_mode<synchronous>, transform_indices = @transform_6, window_bounds = array<i64: 1, 64>}, {pipeline_mode = #tpu.pipeline_mode<synchronous>, transform_indices = @transform_7, window_bounds = array<i64: 64, 32>}, {pipeline_mode = #tpu.pipeline_mode<synchronous>, transform_indices = @transform_8, window_bounds = array<i64: 1, 32>}, {transform_indices = @transform_9, window_bounds = array<i64: 8, 64>}]} {
    %c0 = arith.constant 0 : index
    %c0_0 = arith.constant 0 : index
    %0 = vector.load %arg1[%c0, %c0_0] : memref<8x64xf32, #tpu.memory_space<vmem>>, vector<8x32xf32>
    %c0_1 = arith.constant 0 : index
    %c32 = arith.constant 32 : index
    %1 = vector.load %arg1[%c0_1, %c32] : memref<8x64xf32, #tpu.memory_space<vmem>>, vector<8x32xf32>
    %c0_2 = arith.constant 0 : index
    %c0_3 = arith.constant 0 : index
    %2 = vector.load %arg2[%c0_2, %c0_3] : memref<32x64xf32, #tpu.memory_space<vmem>>, vector<32x64xf32>
    %cst = arith.constant dense<0.000000e+00> : vector<8x64xf32>
    %3 = tpu.matmul %1, %2, %cst {dimension_numbers = #tpu.dot_dimension_numbers<[1], [0], [0], [1], [0, 0, 1, 1], [], []>} : vector<8x32xf32>, vector<32x64xf32>, vector<8x64xf32> -> vector<8x64xf32>
    %c0_4 = arith.constant 0 : index
    %c0_5 = arith.constant 0 : index
    %4 = vector.load %arg3[%c0_4, %c0_5] : memref<1x64xf32, #tpu.memory_space<vmem>>, vector<1x64xf32>
    %5 = vector.broadcast %4 : vector<1x64xf32> to vector<8x64xf32>
    %6 = arith.addf %3, %5 : vector<8x64xf32>
    %7 = arith.mulf %6, %6 : vector<8x64xf32>
    %8 = arith.mulf %6, %7 : vector<8x64xf32>
    %cst_6 = arith.constant 4.471500e-02 : f32
    %9 = vector.broadcast %cst_6 : f32 to vector<8x64xf32>
    %10 = arith.mulf %9, %8 : vector<8x64xf32>
    %11 = arith.addf %6, %10 : vector<8x64xf32>
    %cst_7 = arith.constant 0.797884583 : f32
    %12 = vector.broadcast %cst_7 : f32 to vector<8x64xf32>
    %13 = arith.mulf %12, %11 : vector<8x64xf32>
    %14 = math.tanh %13 : vector<8x64xf32>
    %cst_8 = arith.constant 1.000000e+00 : f32
    %15 = vector.broadcast %cst_8 : f32 to vector<8x64xf32>
    %16 = arith.addf %15, %14 : vector<8x64xf32>
    %cst_9 = arith.constant 5.000000e-01 : f32
    %17 = vector.broadcast %cst_9 : f32 to vector<8x64xf32>
    %18 = arith.mulf %17, %16 : vector<8x64xf32>
    %19 = arith.mulf %6, %18 : vector<8x64xf32>
    %c0_10 = arith.constant 0 : index
    %c0_11 = arith.constant 0 : index
    %20 = vector.load %arg4[%c0_10, %c0_11] : memref<64x32xf32, #tpu.memory_space<vmem>>, vector<64x32xf32>
    %cst_12 = arith.constant dense<0.000000e+00> : vector<8x32xf32>
    %21 = tpu.matmul %19, %20, %cst_12 {dimension_numbers = #tpu.dot_dimension_numbers<[1], [0], [0], [1], [0, 0, 1, 1], [], []>} : vector<8x64xf32>, vector<64x32xf32>, vector<8x32xf32> -> vector<8x32xf32>
    %22 = arith.addf %0, %21 : vector<8x32xf32>
    %c0_13 = arith.constant 0 : index
    %c0_14 = arith.constant 0 : index
    %23 = vector.load %arg5[%c0_13, %c0_14] : memref<1x32xf32, #tpu.memory_space<vmem>>, vector<1x32xf32>
    %24 = vector.broadcast %23 : vector<1x32xf32> to vector<8x32xf32>
    %25 = arith.addf %22, %24 : vector<8x32xf32>
    %c0_15 = arith.constant 0 : index
    %c0_16 = arith.constant 0 : index
    %26 = vector.load %arg6[%c0_15, %c0_16] : memref<32x64xf32, #tpu.memory_space<vmem>>, vector<32x64xf32>
    %cst_17 = arith.constant dense<0.000000e+00> : vector<8x64xf32>
    %27 = tpu.matmul %25, %26, %cst_17 {dimension_numbers = #tpu.dot_dimension_numbers<[1], [0], [0], [1], [0, 0, 1, 1], [], []>} : vector<8x32xf32>, vector<32x64xf32>, vector<8x64xf32> -> vector<8x64xf32>
    %c0_18 = arith.constant 0 : index
    %c0_19 = arith.constant 0 : index
    %28 = vector.load %arg7[%c0_18, %c0_19] : memref<1x64xf32, #tpu.memory_space<vmem>>, vector<1x64xf32>
    %29 = vector.broadcast %28 : vector<1x64xf32> to vector<8x64xf32>
    %30 = arith.addf %27, %29 : vector<8x64xf32>
    %31 = arith.mulf %30, %30 : vector<8x64xf32>
    %32 = arith.mulf %30, %31 : vector<8x64xf32>
    %cst_20 = arith.constant 4.471500e-02 : f32
    %33 = vector.broadcast %cst_20 : f32 to vector<8x64xf32>
    %34 = arith.mulf %33, %32 : vector<8x64xf32>
    %35 = arith.addf %30, %34 : vector<8x64xf32>
    %cst_21 = arith.constant 0.797884583 : f32
    %36 = vector.broadcast %cst_21 : f32 to vector<8x64xf32>
    %37 = arith.mulf %36, %35 : vector<8x64xf32>
    %38 = math.tanh %37 : vector<8x64xf32>
    %cst_22 = arith.constant 1.000000e+00 : f32
    %39 = vector.broadcast %cst_22 : f32 to vector<8x64xf32>
    %40 = arith.addf %39, %38 : vector<8x64xf32>
    %cst_23 = arith.constant 5.000000e-01 : f32
    %41 = vector.broadcast %cst_23 : f32 to vector<8x64xf32>
    %42 = arith.mulf %41, %40 : vector<8x64xf32>
    %43 = arith.mulf %30, %42 : vector<8x64xf32>
    %c0_24 = arith.constant 0 : index
    %c0_25 = arith.constant 0 : index
    %44 = vector.load %arg8[%c0_24, %c0_25] : memref<64x32xf32, #tpu.memory_space<vmem>>, vector<64x32xf32>
    %cst_26 = arith.constant dense<0.000000e+00> : vector<8x32xf32>
    %45 = tpu.matmul %43, %44, %cst_26 {dimension_numbers = #tpu.dot_dimension_numbers<[1], [0], [0], [1], [0, 0, 1, 1], [], []>} : vector<8x64xf32>, vector<64x32xf32>, vector<8x32xf32> -> vector<8x32xf32>
    %46 = arith.addf %1, %45 : vector<8x32xf32>
    %c0_27 = arith.constant 0 : index
    %c0_28 = arith.constant 0 : index
    %47 = vector.load %arg9[%c0_27, %c0_28] : memref<1x32xf32, #tpu.memory_space<vmem>>, vector<1x32xf32>
    %48 = vector.broadcast %47 : vector<1x32xf32> to vector<8x32xf32>
    %49 = arith.addf %46, %48 : vector<8x32xf32>
    %50 = tpu.concatenate %25, %49 in 1 : vector<8x32xf32>, vector<8x32xf32> -> vector<8x64xf32>
    %c0_29 = arith.constant 0 : index
    %c0_30 = arith.constant 0 : index
    %51 = vector.load %arg10[%c0_29, %c0_30] : memref<8x64xf32, #tpu.memory_space<vmem>>, vector<8x64xf32>
    tpu.vector_store %arg10[%c0_29, %c0_30], %50 {strides = array<i32>} : memref<8x64xf32, #tpu.memory_space<vmem>>, vector<8x64xf32>,
    return
  }
  func.func @transform_0(%arg0: i32) -> (i32, i32) {
    %c0_i32 = arith.constant 0 : i32
    %c0_i32_0 = arith.constant 0 : i32
    return %arg0, %c0_i32 : i32, i32
  }
  func.func @transform_1(%arg0: i32) -> (i32, i32) {
    %c0_i32 = arith.constant 0 : i32
    %c0_i32_0 = arith.constant 0 : i32
    %c0_i32_1 = arith.constant 0 : i32
    return %c0_i32, %c0_i32_0 : i32, i32
  }
  func.func @transform_2(%arg0: i32) -> (i32, i32) {
    %c0_i32 = arith.constant 0 : i32
    %c0_i32_0 = arith.constant 0 : i32
    %c0_i32_1 = arith.constant 0 : i32
    return %c0_i32, %c0_i32_0 : i32, i32
  }
  func.func @transform_3(%arg0: i32) -> (i32, i32) {
    %c0_i32 = arith.constant 0 : i32
    %c0_i32_0 = arith.constant 0 : i32
    %c0_i32_1 = arith.constant 0 : i32
    return %c0_i32, %c0_i32_0 : i32, i32
  }
  func.func @transform_4(%arg0: i32) -> (i32, i32) {
    %c0_i32 = arith.constant 0 : i32
    %c0_i32_0 = arith.constant 0 : i32
    %c0_i32_1 = arith.constant 0 : i32
    return %c0_i32, %c0_i32_0 : i32, i32
  }
  func.func @transform_5(%arg0: i32) -> (i32, i32) {
    %c0_i32 = arith.constant 0 : i32
    %c0_i32_0 = arith.constant 0 : i32
    %c0_i32_1 = arith.constant 0 : i32
    return %c0_i32, %c0_i32_0 : i32, i32
  }
  func.func @transform_6(%arg0: i32) -> (i32, i32) {
    %c0_i32 = arith.constant 0 : i32
    %c0_i32_0 = arith.constant 0 : i32
    %c0_i32_1 = arith.constant 0 : i32
    return %c0_i32, %c0_i32_0 : i32, i32
  }
  func.func @transform_7(%arg0: i32) -> (i32, i32) {
    %c0_i32 = arith.constant 0 : i32
    %c0_i32_0 = arith.constant 0 : i32
    %c0_i32_1 = arith.constant 0 : i32
    return %c0_i32, %c0_i32_0 : i32, i32
  }
  func.func @transform_8(%arg0: i32) -> (i32, i32) {
    %c0_i32 = arith.constant 0 : i32
    %c0_i32_0 = arith.constant 0 : i32
    %c0_i32_1 = arith.constant 0 : i32
    return %c0_i32, %c0_i32_0 : i32, i32
  }
  func.func @transform_9(%arg0: i32) -> (i32, i32) {
    %c0_i32 = arith.constant 0 : i32
    %c0_i32_0 = arith.constant 0 : i32
    return %arg0, %c0_i32 : i32, i32
  }
}

</mosaic_0001>

<llo_original>
// kernel: coupling_block.1
$region0: #{coupling_block.1}
  #allocation0 [shape = 'u32[]', space=smem, size = 0x4, offset = 0x4, fixed_abs, tag = 'smem constant byte address 0x4 - core index']
  #allocation1 [shape = 'u32[144,128]{1,0:T(1,128)}', space=vmem, size = 0x12000, scoped, tag = 'internal scratch']
  %s0 = inlined_call_operand.vmem [shape: f32[16,64], index: 0, kind: input, shape index: {}]
  %s1 = inlined_call_operand.vmem [shape: f32[32,64], index: 1, kind: input, shape index: {}]
  %s2 = inlined_call_operand.vmem [shape: f32[1,64], index: 2, kind: input, shape index: {}]
  %s3 = inlined_call_operand.vmem [shape: f32[64,32], index: 3, kind: input, shape index: {}]
  %s4 = inlined_call_operand.vmem [shape: f32[1,32], index: 4, kind: input, shape index: {}]
  %s5 = inlined_call_operand.vmem [shape: f32[32,64], index: 5, kind: input, shape index: {}]
  %s6 = inlined_call_operand.vmem [shape: f32[1,64], index: 6, kind: input, shape index: {}]
  %s7 = inlined_call_operand.vmem [shape: f32[64,32], index: 7, kind: input, shape index: {}]
  %s8 = inlined_call_operand.vmem [shape: f32[1,32], index: 8, kind: input, shape index: {}]
  %s9 = inlined_call_operand.hbm [shape: f32[16,64], index: 9, kind: output, shape index: {}]
  %s10 = sld [smem:[#allocation0]]
  $region69: #{coupling_block.1} parent=0
    _
  %s12 = ssub.s32 1, %s10
  %s13 = scalar_select 0, %s12, %s10
  $region1: #{coupling_block.1} parent=0
    #allocation2 [shape = 'u8[8192]{0}', space=vmem, size = 0x2000, scoped, tag = 'output window, operand 0']
    #allocation3 [shape = 's32[2]{0}', space=sflag, size = 0x8, scoped, tag = 'scoped memory for coupling_block.1']
    %14 = vsyncpa [#allocation3], 0
    %s15 = scalar_lea.sflag [#allocation3], 1
    %16 = vsyncpa %s15, 0
    loop: start=0, step=1, limit=4
    $region2: #{coupling_block.1} parent=1 // loop_pre_header
      _
    $region3: #{coupling_block.1} parent=1 // loop_header
      %s18 = sphi 0, %s22
      %p19 = scmp.ge.s32.totalorder %s18, 4
      %s28 = sphi 0, %s30
      %s31 = sphi 0, %s28
      %s32 = sphi 0, %s31
      %s48 = sphi 0, %s32
      %s52 = sphi 0, %s52
      %s54 = sphi 0, %s52
      %s55 = sphi 0, %s54
      %s69 = sphi 0, %s55
      %s73 = sphi 0, %s73
      %s75 = sphi 0, %s73
      %s76 = sphi 0, %s75
      %s90 = sphi 0, %s76
      %s94 = sphi 0, %s94
      %s96 = sphi 0, %s94
      %s97 = sphi 0, %s96
      %s111 = sphi 0, %s97
      %s115 = sphi 0, %s115
      %s117 = sphi 0, %s115
      %s118 = sphi 0, %s117
      %s132 = sphi 0, %s118
      %s136 = sphi 0, %s136
      %s138 = sphi 0, %s136
      %s139 = sphi 0, %s138
      %s153 = sphi 0, %s139
      %s157 = sphi 0, %s157
      %s159 = sphi 0, %s157
      %s160 = sphi 0, %s159
      %s174 = sphi 0, %s160
      %s178 = sphi 0, %s178
      %s180 = sphi 0, %s178
      %s181 = sphi 0, %s180
      %s195 = sphi 0, %s181
      %s199 = sphi 0, %s199
      %s201 = sphi 0, %s199
      %s202 = sphi 0, %s201
      %s216 = sphi 0, %s202
      %s222 = sphi 0, %s224
      %s225 = sphi 0, %s222
      %s226 = sphi 0, %s225
      %s242 = sphi 0, %s226
    $region4: #{coupling_block.1} parent=1 // loop_header_branch
      %21 = sbr.rel (%p19) target = $region8
    $region5: #{coupling_block.1} parent=1 // loop_body
      %s23 = ssub.s32 %s18, 1
      %s24 = ssub.s32 %s18, 2
      %s25 = sadd.s32 %s18, 1
      %s26 = ssub.s32 %s18, %s25
      %p27 = scmp.eq.s32.totalorder %s26, 0
      %s29 = sadd.s32 %s28, 1
      %s30 = scalar_select %p27, %s28, %s29
      %p33 = pneg %p27
      %p34 = scmp.eq.s32.totalorder %s18, 1
      %p35 = por %p33, %p34
      %p36 = scmp.ne.s32.totalorder %s28, %s31
      %p37 = scmp.eq.s32.totalorder %s18, 0
      %p38 = por %p36, %p37
      %p39 = scmp.ne.s32.totalorder %s28, %s31
      %p40 = scmp.eq.s32.totalorder %s23, 1
      %p41 = por %p39, %p40
      %p42 = scmp.ne.s32.totalorder %s31, %s32
      %p43 = scmp.eq.s32.totalorder %s23, 0
      %p44 = por %p42, %p43
      %p45 = scmp.ne.s32.totalorder %s31, %s32
      %p46 = scmp.eq.s32.totalorder %s24, 1
      %p47 = por %p45, %p46
      %p49 = scmp.ne.s32.totalorder %s32, %s48
      %p50 = scmp.eq.s32.totalorder %s24, 0
      %p51 = por %p49, %p50
      %s53 = sadd.s32 %s52, 1
      %p56 = scmp.eq.s32.totalorder %s18, 1
      %p57 = scmp.ne.s32.totalorder %s52, %s54
      %p58 = scmp.eq.s32.totalorder %s18, 0
      %p59 = por %p57, %p58
      %p60 = scmp.ne.s32.totalorder %s52, %s54
      %p61 = scmp.eq.s32.totalorder %s23, 1
      %p62 = por %p60, %p61
      %p63 = scmp.ne.s32.totalorder %s54, %s55
      %p64 = scmp.eq.s32.totalorder %s23, 0
      %p65 = por %p63, %p64
      %p66 = scmp.ne.s32.totalorder %s54, %s55
      %p67 = scmp.eq.s32.totalorder %s24, 1
      %p68 = por %p66, %p67
      %p70 = scmp.ne.s32.totalorder %s55, %s69
      %p71 = scmp.eq.s32.totalorder %s24, 0
      %p72 = por %p70, %p71
      %s74 = sadd.s32 %s73, 1
      %p77 = scmp.eq.s32.totalorder %s18, 1
      %p78 = scmp.ne.s32.totalorder %s73, %s75
      %p79 = scmp.eq.s32.totalorder %s18, 0
      %p80 = por %p78, %p79
      %p81 = scmp.ne.s32.totalorder %s73, %s75
      %p82 = scmp.eq.s32.totalorder %s23, 1
      %p83 = por %p81, %p82
      %p84 = scmp.ne.s32.totalorder %s75, %s76
      %p85 = scmp.eq.s32.totalorder %s23, 0
      %p86 = por %p84, %p85
      %p87 = scmp.ne.s32.totalorder %s75, %s76
      %p88 = scmp.eq.s32.totalorder %s24, 1
      %p89 = por %p87, %p88
      %p91 = scmp.ne.s32.totalorder %s76, %s90
      %p92 = scmp.eq.s32.totalorder %s24, 0
      %p93 = por %p91, %p92
      %s95 = sadd.s32 %s94, 1
      %p98 = scmp.eq.s32.totalorder %s18, 1
      %p99 = scmp.ne.s32.totalorder %s94, %s96
      %p100 = scmp.eq.s32.totalorder %s18, 0
      %p101 = por %p99, %p100
      %p102 = scmp.ne.s32.totalorder %s94, %s96
      %p103 = scmp.eq.s32.totalorder %s23, 1
      %p104 = por %p102, %p103
      %p105 = scmp.ne.s32.totalorder %s96, %s97
      %p106 = scmp.eq.s32.totalorder %s23, 0
      %p107 = por %p105, %p106
      %p108 = scmp.ne.s32.totalorder %s96, %s97
      %p109 = scmp.eq.s32.totalorder %s24, 1
      %p110 = por %p108, %p109
      %p112 = scmp.ne.s32.totalorder %s97, %s111
      %p113 = scmp.eq.s32.totalorder %s24, 0
      %p114 = por %p112, %p113
      %s116 = sadd.s32 %s115, 1
      %p119 = scmp.eq.s32.totalorder %s18, 1
      %p120 = scmp.ne.s32.totalorder %s115, %s117
      %p121 = scmp.eq.s32.totalorder %s18, 0
      %p122 = por %p120, %p121
      %p123 = scmp.ne.s32.totalorder %s115, %s117
      %p124 = scmp.eq.s32.totalorder %s23, 1
      %p125 = por %p123, %p124
      %p126 = scmp.ne.s32.totalorder %s117, %s118
      %p127 = scmp.eq.s32.totalorder %s23, 0
      %p128 = por %p126, %p127
      %p129 = scmp.ne.s32.totalorder %s117, %s118
      %p130 = scmp.eq.s32.totalorder %s24, 1
      %p131 = por %p129, %p130
      %p133 = scmp.ne.s32.totalorder %s118, %s132
      %p134 = scmp.eq.s32.totalorder %s24, 0
      %p135 = por %p133, %p134
      %s137 = sadd.s32 %s136, 1
      %p140 = scmp.eq.s32.totalorder %s18, 1
      %p141 = scmp.ne.s32.totalorder %s136, %s138
      %p142 = scmp.eq.s32.totalorder %s18, 0
      %p143 = por %p141, %p142
      %p144 = scmp.ne.s32.totalorder %s136, %s138
      %p145 = scmp.eq.s32.totalorder %s23, 1
      %p146 = por %p144, %p145
      %p147 = scmp.ne.s32.totalorder %s138, %s139
      %p148 = scmp.eq.s32.totalorder %s23, 0
      %p149 = por %p147, %p148
      %p150 = scmp.ne.s32.totalorder %s138, %s139
      %p151 = scmp.eq.s32.totalorder %s24, 1
      %p152 = por %p150, %p151
      %p154 = scmp.ne.s32.totalorder %s139, %s153
      %p155 = scmp.eq.s32.totalorder %s24, 0
      %p156 = por %p154, %p155
      %s158 = sadd.s32 %s157, 1
      %p161 = scmp.eq.s32.totalorder %s18, 1
      %p162 = scmp.ne.s32.totalorder %s157, %s159
      %p163 = scmp.eq.s32.totalorder %s18, 0
      %p164 = por %p162, %p163
      %p165 = scmp.ne.s32.totalorder %s157, %s159
      %p166 = scmp.eq.s32.totalorder %s23, 1
      %p167 = por %p165, %p166
      %p168 = scmp.ne.s32.totalorder %s159, %s160
      %p169 = scmp.eq.s32.totalorder %s23, 0
      %p170 = por %p168, %p169
      %p171 = scmp.ne.s32.totalorder %s159, %s160
      %p172 = scmp.eq.s32.totalorder %s24, 1
      %p173 = por %p171, %p172
      %p175 = scmp.ne.s32.totalorder %s160, %s174
      %p176 = scmp.eq.s32.totalorder %s24, 0
      %p177 = por %p175, %p176
      %s179 = sadd.s32 %s178, 1
      %p182 = scmp.eq.s32.totalorder %s18, 1
      %p183 = scmp.ne.s32.totalorder %s178, %s180
      %p184 = scmp.eq.s32.totalorder %s18, 0
      %p185 = por %p183, %p184
      %p186 = scmp.ne.s32.totalorder %s178, %s180
      %p187 = scmp.eq.s32.totalorder %s23, 1
      %p188 = por %p186, %p187
      %p189 = scmp.ne.s32.totalorder %s180, %s181
      %p190 = scmp.eq.s32.totalorder %s23, 0
      %p191 = por %p189, %p190
      %p192 = scmp.ne.s32.totalorder %s180, %s181
      %p193 = scmp.eq.s32.totalorder %s24, 1
      %p194 = por %p192, %p193
      %p196 = scmp.ne.s32.totalorder %s181, %s195
      %p197 = scmp.eq.s32.totalorder %s24, 0
      %p198 = por %p196, %p197
      %s200 = sadd.s32 %s199, 1
      %p203 = scmp.eq.s32.totalorder %s18, 1
      %p204 = scmp.ne.s32.totalorder %s199, %s201
      %p205 = scmp.eq.s32.totalorder %s18, 0
      %p206 = por %p204, %p205
      %p207 = scmp.ne.s32.totalorder %s199, %s201
      %p208 = scmp.eq.s32.totalorder %s23, 1
      %p209 = por %p207, %p208
      %p210 = scmp.ne.s32.totalorder %s201, %s202
      %p211 = scmp.eq.s32.totalorder %s23, 0
      %p212 = por %p210, %p211
      %p213 = scmp.ne.s32.totalorder %s201, %s202
      %p214 = scmp.eq.s32.totalorder %s24, 1
      %p215 = por %p213, %p214
      %p217 = scmp.ne.s32.totalorder %s202, %s216
      %p218 = scmp.eq.s32.totalorder %s24, 0
      %p219 = por %p217, %p218
      %s220 = ssub.s32 %s18, %s25
      %p221 = scmp.eq.s32.totalorder %s220, 0
      %s223 = sadd.s32 %s222, 1
      %s224 = scalar_select %p221, %s222, %s223
      %p227 = pneg %p221
      %p228 = scmp.eq.s32.totalorder %s18, 1
      %p229 = por %p227, %p228
      %p230 = scmp.ne.s32.totalorder %s222, %s225
      %p231 = scmp.eq.s32.totalorder %s18, 0
      %p232 = por %p230, %p231
      %p233 = scmp.ne.s32.totalorder %s222, %s225
      %p234 = scmp.eq.s32.totalorder %s23, 1
      %p235 = por %p233, %p234
      %p236 = scmp.ne.s32.totalorder %s225, %s226
      %p237 = scmp.eq.s32.totalorder %s23, 0
      %p238 = por %p236, %p237
      %p239 = scmp.ne.s32.totalorder %s225, %s226
      %p240 = scmp.eq.s32.totalorder %s24, 1
      %p241 = por %p239, %p240
      %p243 = scmp.ne.s32.totalorder %s226, %s242
      %p244 = scmp.eq.s32.totalorder %s24, 0
      %p245 = por %p243, %p244
      %p246 = scmp.le.s32.totalorder 1, %s18
      %p247 = scmp.lt.s32.totalorder %s18, 3
      %p248 = pnand %p246, %p247
      %p249 = pneg %p248
      // Predicated region
      $region9: #{coupling_block.1} parent=5 // pred_check
        _
      $region10: #{coupling_block.1} parent=5 // pred_check_branch
        %251 = sbr.rel (%p248) target = $region12
      $region11: #{coupling_block.1} parent=5 // pred_region
        %s252 = ssub.s32 %s18, 1
        // Predicated region
        $region13: #{coupling_block.1} parent=11 // pred_check
          %p253 = pneg %p65
        $region14: #{coupling_block.1} parent=11 // pred_check_branch
          %255 = sbr.rel (%p253) target = $region16
        $region15: #{coupling_block.1} parent=11 // pred_region
          _
        $region16: #{coupling_block.1} parent=11 // pred_fallthru
          _
        // Predicated region
        $region17: #{coupling_block.1} parent=11 // pred_check
          %p256 = pneg %p86
        $region18: #{coupling_block.1} parent=11 // pred_check_branch
          %258 = sbr.rel (%p256) target = $region20
        $region19: #{coupling_block.1} parent=11 // pred_region
          _
        $region20: #{coupling_block.1} parent=11 // pred_fallthru
          _
        // Predicated region
        $region21: #{coupling_block.1} parent=11 // pred_check
          %p259 = pneg %p107
        $region22: #{coupling_block.1} parent=11 // pred_check_branch
          %261 = sbr.rel (%p259) target = $region24
        $region23: #{coupling_block.1} parent=11 // pred_region
          _
        $region24: #{coupling_block.1} parent=11 // pred_fallthru
          _
        // Predicated region
        $region25: #{coupling_block.1} parent=11 // pred_check
          %p262 = pneg %p128
        $region26: #{coupling_block.1} parent=11 // pred_check_branch
          %264 = sbr.rel (%p262) target = $region28
        $region27: #{coupling_block.1} parent=11 // pred_region
          _
        $region28: #{coupling_block.1} parent=11 // pred_fallthru
          _
        // Predicated region
        $region29: #{coupling_block.1} parent=11 // pred_check
          %p265 = pneg %p149
        $region30: #{coupling_block.1} parent=11 // pred_check_branch
          %267 = sbr.rel (%p265) target = $region32
        $region31: #{coupling_block.1} parent=11 // pred_region
          _
        $region32: #{coupling_block.1} parent=11 // pred_fallthru
          _
        // Predicated region
        $region33: #{coupling_block.1} parent=11 // pred_check
          %p268 = pneg %p170
        $region34: #{coupling_block.1} parent=11 // pred_check_branch
          %270 = sbr.rel (%p268) target = $region36
        $region35: #{coupling_block.1} parent=11 // pred_region
          _
        $region36: #{coupling_block.1} parent=11 // pred_fallthru
          _
        // Predicated region
        $region37: #{coupling_block.1} parent=11 // pred_check
          %p271 = pneg %p191
        $region38: #{coupling_block.1} parent=11 // pred_check_branch
          %273 = sbr.rel (%p271) target = $region40
        $region39: #{coupling_block.1} parent=11 // pred_region
          _
        $region40: #{coupling_block.1} parent=11 // pred_fallthru
          _
        // Predicated region
        $region41: #{coupling_block.1} parent=11 // pred_check
          %p274 = pneg %p212
        $region42: #{coupling_block.1} parent=11 // pred_check_branch
          %276 = sbr.rel (%p274) target = $region44
        $region43: #{coupling_block.1} parent=11 // pred_region
          _
        $region44: #{coupling_block.1} parent=11 // pred_fallthru
          _
      $region12: #{coupling_block.1} parent=5 // pred_fallthru
        _
      %p277 = scmp.lt.s32.totalorder %s18, 2
      // Predicated region
      $region45: #{coupling_block.1} parent=5 // pred_check
        %p278 = pneg %p277
      $region46: #{coupling_block.1} parent=5 // pred_check_branch
        %280 = sbr.rel (%p278) target = $region48
      $region47: #{coupling_block.1} parent=5 // pred_region
        // Predicated region
        $region49: #{coupling_block.1} parent=47 // pred_check
          %p281 = pneg %p38
        $region50: #{coupling_block.1} parent=47 // pred_check_branch
          %283 = sbr.rel (%p281) target = $region52
        $region51: #{coupling_block.1} parent=47 // pred_region
          %p284 = scmp.lt.s32.totalorder %s18, 1
          %s285 = scalar_select %p284, %s18, 1
          %s286 = smul.addr %s285, 8
          %s287 = scalar_lea.vmem %s0, %s286
        $region52: #{coupling_block.1} parent=47 // pred_fallthru
          _
      $region48: #{coupling_block.1} parent=5 // pred_fallthru
        _
      %p288 = scmp.le.s32.totalorder 1, %s18
      %p289 = scmp.lt.s32.totalorder %s18, 3
      %p290 = pnand %p288, %p289
      %p291 = pneg %p290
      // Predicated region
      $region53: #{coupling_block.1} parent=5 // pred_check
        _
      $region54: #{coupling_block.1} parent=5 // pred_check_branch
        %293 = sbr.rel (%p290) target = $region56
      $region55: #{coupling_block.1} parent=5 // pred_region
        %s294 = ssub.s32 %s18, 1
        %p295 = scmp.lt.s32.totalorder %s23, 1
        %s296 = scalar_select %p295, %s23, 1
        %s297 = smul.addr %s296, 8
        %s298 = scalar_lea.vmem %s0, %s297
        %p299 = pneg %p44
        %p300 = pneg %p41
        %p301 = pneg %p65
        %p302 = pneg %p62
        %p303 = pneg %p86
        %p304 = pneg %p83
        %p305 = pneg %p107
        %p306 = pneg %p104
        %p307 = pneg %p128
        %p308 = pneg %p125
        %p309 = pneg %p149
        %p310 = pneg %p146
        %p311 = pneg %p170
        %p312 = pneg %p167
        %p313 = pneg %p191
        %p314 = pneg %p188
        %p315 = pneg %p212
        %p316 = pneg %p209
        %p317 = pneg %p238
        %p318 = pneg %p235
        %s319 = sand.u32 %s225, 1
        %s320 = scalar_lea.sflag [#allocation3], %s319
        %s321 = sand.u32 %s225, 1
        %s322 = smul.addr %s321, 8
        %s323 = scalar_lea.vmem [#allocation2], %s322
        %p324 = scmp.lt.s32.totalorder %s23, 1
        %s325 = scalar_select %p324, %s23, 1
        %s326 = smul.addr %s325, 8
        %s327 = scalar_lea.vmem %s0, %s326
        %v328 = vld [vmem:[%s327] sm:$0xff]
        %v329 = vld [vmem:[%s1] sm:$0xff]
        %v330 = vld [vmem:[%s1 + $0x8] sm:$0xff]
        %v331 = vld [vmem:[%s1 + $0x10] sm:$0xff]
        %v332 = vld [vmem:[%s1 + $0x18] sm:$0xff]
        %v333 = vld [vmem:[%s2] sm:$0x1]
        %v335 = vlaneseq
        %v336 = vshrl.u32 %v335, 7
        %v337 = vsub.s32 0, %v336
        %v338 = vrot.slane %v333, %v337
        %341 = vrot.lane.b32.xlu0 %v328, 96
        %v342 = vpop.permute.xlu0 %341
        %vm343 = vcmask 261120
        %v344 = vsel %vm343, %v342, 0
        %346 = vmatprep.subr.mxu0 0.0
        %347 = vmatpush1.msra.mxu0 %v329
        %348 = vmatprep.subr.mxu0 0.0
        %349 = vmatpush1.msra.mxu0 %v330
        %350 = vmatprep.subr.mxu0 0.0
        %351 = vmatpush1.msra.mxu0 %v331
        %352 = vmatprep.subr.mxu0 0.0
        %353 = vmatpush1.msra.mxu0 %v332
        %354 = vmatprep.subr.mxu0 0.0
        %355 = vmatpush1.msra.mxu0 0.0
        %356 = vmatprep.subr.mxu0 0.0
        %357 = vmatpush1.msra.mxu0 0.0
        %358 = vmatprep.subr.mxu0 0.0
        %359 = vmatpush1.msra.mxu0 0.0
        %360 = vmatprep.subr.mxu0 0.0
        %361 = vmatpush1.msra.mxu0 0.0
        %362 = vmatprep.subr.mxu0 0.0
        %363 = vmatpush1.msra.mxu0 0.0
        %364 = vmatprep.subr.mxu0 0.0
        %365 = vmatpush1.msra.mxu0 0.0
        %366 = vmatprep.subr.mxu0 0.0
        %367 = vmatpush1.msra.mxu0 0.0
        %368 = vmatprep.subr.mxu0 0.0
        %369 = vmatpush1.msra.mxu0 0.0
        %370 = vmatprep.subr.mxu0 0.0
        %371 = vmatpush1.msra.mxu0 0.0
        %372 = vmatprep.subr.mxu0 0.0
        %373 = vmatpush1.msra.mxu0 0.0
        %374 = vmatprep.subr.mxu0 0.0
        %375 = vmatpush1.msra.mxu0 0.0
        %376 = vmatprep.subr.mxu0 0.0
        %377 = vmatpush1.msra.mxu0 0.0
        %378 = vmatprep.subr.mxu0 0.0
        %379 = vmatpush1.msra.mxu0 0.0
        %380 = vmatprep.subr.mxu0 0.0
        %381 = vmatpush1.msra.mxu0 0.0
        %382 = vmatprep.subr.mxu0 0.0
        %383 = vmatpush1.msra.mxu0 0.0
        %384 = vmatprep.subr.mxu0 0.0
        %385 = vmatpush1.msra.mxu0 0.0
        %386 = vmatprep.subr.mxu0 0.0
        %387 = vmatpush1.msra.mxu0 0.0
        %388 = vmatprep.subr.mxu0 0.0
        %389 = vmatpush1.msra.mxu0 0.0
        %390 = vmatprep.subr.mxu0 0.0
        %391 = vmatpush1.msra.mxu0 0.0
        %392 = vmatprep.subr.mxu0 0.0
        %393 = vmatpush1.msra.mxu0 0.0
        %394 = vmatprep.subr.mxu0 0.0
        %395 = vmatpush1.msra.mxu0 0.0
        %396 = vmatprep.subr.mxu0 0.0
        %397 = vmatpush1.msra.mxu0 0.0
        %398 = vmatprep.subr.mxu0 0.0
        %399 = vmatpush1.msra.mxu0 0.0
        %400 = vmatprep.subr.mxu0 0.0
        %401 = vmatpush1.msra.mxu0 0.0
        %402 = vmatprep.subr.mxu0 0.0
        %403 = vmatpush1.msra.mxu0 0.0
        %404 = vmatprep.subr.mxu0 0.0
        %405 = vmatpush1.msra.mxu0 0.0
        %406 = vmatprep.subr.mxu0 0.0
        %407 = vmatpush1.msra.mxu0 0.0
        %408 = vmatprep.subr.mxu0 0.0
        %409 = vmatpush1.msra.mxu0 0.0
        %410 = vmatprep.mubr.f32.mxu0 0.0
        %411 = vmatmul.mubr.f32.gmra.mrb[0].mxu0 %v344
        %v412 = vpop.f32.mrb[0].mxu0
        %v413 = vadd.f32 %v338, %v412
        %v414 = vpop.f32.mrb[0].mxu0
        %415 = vdwg.mxu0
        %v416 = vmul.f32 %v413, %v413
        %v417 = vmul.f32 %v413, %v416
        %v418 = vmul.f32 %v417, 0.044715
        %v419 = vadd.f32 %v413, %v418
        %v420 = vmul.f32 %v419, 0.7978846
        %v421 = vtanh.pop %v420
        %v422 = vadd.f32 %v421, 1.0
        %v423 = vmul.f32 %v422, 0.5
        %v424 = vmul.f32 %v413, %v423
        %v425 = vld [vmem:[%s3] sm:$0xff]
        %v426 = vld [vmem:[%s3 + $0x8] sm:$0xff]
        %v427 = vld [vmem:[%s3 + $0x10] sm:$0xff]
        %v428 = vld [vmem:[%s3 + $0x18] sm:$0xff]
        %v429 = vld [vmem:[%s3 + $0x20] sm:$0xff]
        %v430 = vld [vmem:[%s3 + $0x28] sm:$0xff]
        %v431 = vld [vmem:[%s3 + $0x30] sm:$0xff]
        %v432 = vld [vmem:[%s3 + $0x38] sm:$0xff]
        %vm433 = vcmask 523264
        %v435 = vsel %vm433, %v424, 0
        %437 = vmatprep.subr.mxu0 0.0
        %438 = vmatpush1.msra.mxu0 %v425
        %439 = vmatprep.subr.mxu0 0.0
        %440 = vmatpush1.msra.mxu0 %v426
        %441 = vmatprep.subr.mxu0 0.0
        %442 = vmatpush1.msra.mxu0 %v427
        %443 = vmatprep.subr.mxu0 0.0
        %444 = vmatpush1.msra.mxu0 %v428
        %445 = vmatprep.subr.mxu0 0.0
        %446 = vmatpush1.msra.mxu0 %v429
        %447 = vmatprep.subr.mxu0 0.0
        %448 = vmatpush1.msra.mxu0 %v430
        %449 = vmatprep.subr.mxu0 0.0
        %450 = vmatpush1.msra.mxu0 %v431
        %451 = vmatprep.subr.mxu0 0.0
        %452 = vmatpush1.msra.mxu0 %v432
        %453 = vmatprep.subr.mxu0 0.0
        %454 = vmatpush1.msra.mxu0 0.0
        %455 = vmatprep.subr.mxu0 0.0
        %456 = vmatpush1.msra.mxu0 0.0
        %457 = vmatprep.subr.mxu0 0.0
        %458 = vmatpush1.msra.mxu0 0.0
        %459 = vmatprep.subr.mxu0 0.0
        %460 = vmatpush1.msra.mxu0 0.0
        %461 = vmatprep.subr.mxu0 0.0
        %462 = vmatpush1.msra.mxu0 0.0
        %463 = vmatprep.subr.mxu0 0.0
        %464 = vmatpush1.msra.mxu0 0.0
        %465 = vmatprep.subr.mxu0 0.0
        %466 = vmatpush1.msra.mxu0 0.0
        %467 = vmatprep.subr.mxu0 0.0
        %468 = vmatpush1.msra.mxu0 0.0
        %469 = vmatprep.subr.mxu0 0.0
        %470 = vmatpush1.msra.mxu0 0.0
        %471 = vmatprep.subr.mxu0 0.0
        %472 = vmatpush1.msra.mxu0 0.0
        %473 = vmatprep.subr.mxu0 0.0
        %474 = vmatpush1.msra.mxu0 0.0
        %475 = vmatprep.subr.mxu0 0.0
        %476 = vmatpush1.msra.mxu0 0.0
        %477 = vmatprep.subr.mxu0 0.0
        %478 = vmatpush1.msra.mxu0 0.0
        %479 = vmatprep.subr.mxu0 0.0
        %480 = vmatpush1.msra.mxu0 0.0
        %481 = vmatprep.subr.mxu0 0.0
        %482 = vmatpush1.msra.mxu0 0.0
        %483 = vmatprep.subr.mxu0 0.0
        %484 = vmatpush1.msra.mxu0 0.0
        %485 = vmatprep.subr.mxu0 0.0
        %486 = vmatpush1.msra.mxu0 0.0
        %487 = vmatprep.subr.mxu0 0.0
        %488 = vmatpush1.msra.mxu0 0.0
        %489 = vmatprep.subr.mxu0 0.0
        %490 = vmatpush1.msra.mxu0 0.0
        %491 = vmatprep.subr.mxu0 0.0
        %492 = vmatpush1.msra.mxu0 0.0
        %493 = vmatprep.subr.mxu0 0.0
        %494 = vmatpush1.msra.mxu0 0.0
        %495 = vmatprep.subr.mxu0 0.0
        %496 = vmatpush1.msra.mxu0 0.0
        %497 = vmatprep.subr.mxu0 0.0
        %498 = vmatpush1.msra.mxu0 0.0
        %499 = vmatprep.subr.mxu0 0.0
        %500 = vmatpush1.msra.mxu0 0.0
        %501 = vmatprep.mubr.f32.mxu0 0.0
        %502 = vmatmul.mubr.f32.gmra.mrb[0].mxu0 %v435
        %v503 = vpop.f32.mrb[0].mxu0
        %v504 = vadd.f32 0.0, %v503
        %v505 = vpop.f32.mrb[0].mxu0
        %506 = vdwg.mxu0
        %v507 = vadd.f32 %v328, %v504
        %v508 = vld [vmem:[%s4] sm:$0x1]
        %v510 = vlaneseq
        %v511 = vshrl.u32 %v510, 7
        %v512 = vsub.s32 0, %v511
        %v513 = vrot.slane %v508, %v512
        %v515 = vadd.f32 %v507, %v513
        %v516 = vld [vmem:[%s5] sm:$0xff]
        %v517 = vld [vmem:[%s5 + $0x8] sm:$0xff]
        %v518 = vld [vmem:[%s5 + $0x10] sm:$0xff]
        %v519 = vld [vmem:[%s5 + $0x18] sm:$0xff]
        %v520 = vld [vmem:[%s6] sm:$0x1]
        %v522 = vlaneseq
        %v523 = vshrl.u32 %v522, 7
        %v524 = vsub.s32 0, %v523
        %v525 = vrot.slane %v520, %v524
        %v528 = vsel %vm343, %v515, 0
        %530 = vmatprep.subr.mxu0 0.0
        %531 = vmatpush1.msra.mxu0 %v516
        %532 = vmatprep.subr.mxu0 0.0
        %533 = vmatpush1.msra.mxu0 %v517
        %534 = vmatprep.subr.mxu0 0.0
        %535 = vmatpush1.msra.mxu0 %v518
        %536 = vmatprep.subr.mxu0 0.0
        %537 = vmatpush1.msra.mxu0 %v519
        %538 = vmatprep.subr.mxu0 0.0
        %539 = vmatpush1.msra.mxu0 0.0
        %540 = vmatprep.subr.mxu0 0.0
        %541 = vmatpush1.msra.mxu0 0.0
        %542 = vmatprep.subr.mxu0 0.0
        %543 = vmatpush1.msra.mxu0 0.0
        %544 = vmatprep.subr.mxu0 0.0
        %545 = vmatpush1.msra.mxu0 0.0
        %546 = vmatprep.subr.mxu0 0.0
        %547 = vmatpush1.msra.mxu0 0.0
        %548 = vmatprep.subr.mxu0 0.0
        %549 = vmatpush1.msra.mxu0 0.0
        %550 = vmatprep.subr.mxu0 0.0
        %551 = vmatpush1.msra.mxu0 0.0
        %552 = vmatprep.subr.mxu0 0.0
        %553 = vmatpush1.msra.mxu0 0.0
        %554 = vmatprep.subr.mxu0 0.0
        %555 = vmatpush1.msra.mxu0 0.0
        %556 = vmatprep.subr.mxu0 0.0
        %557 = vmatpush1.msra.mxu0 0.0
        %558 = vmatprep.subr.mxu0 0.0
        %559 = vmatpush1.msra.mxu0 0.0
        %560 = vmatprep.subr.mxu0 0.0
        %561 = vmatpush1.msra.mxu0 0.0
        %562 = vmatprep.subr.mxu0 0.0
        %563 = vmatpush1.msra.mxu0 0.0
        %564 = vmatprep.subr.mxu0 0.0
        %565 = vmatpush1.msra.mxu0 0.0
        %566 = vmatprep.subr.mxu0 0.0
        %567 = vmatpush1.msra.mxu0 0.0
        %568 = vmatprep.subr.mxu0 0.0
        %569 = vmatpush1.msra.mxu0 0.0
        %570 = vmatprep.subr.mxu0 0.0
        %571 = vmatpush1.msra.mxu0 0.0
        %572 = vmatprep.subr.mxu0 0.0
        %573 = vmatpush1.msra.mxu0 0.0
        %574 = vmatprep.subr.mxu0 0.0
        %575 = vmatpush1.msra.mxu0 0.0
        %576 = vmatprep.subr.mxu0 0.0
        %577 = vmatpush1.msra.mxu0 0.0
        %578 = vmatprep.subr.mxu0 0.0
        %579 = vmatpush1.msra.mxu0 0.0
        %580 = vmatprep.subr.mxu0 0.0
        %581 = vmatpush1.msra.mxu0 0.0
        %582 = vmatprep.subr.mxu0 0.0
        %583 = vmatpush1.msra.mxu0 0.0
        %584 = vmatprep.subr.mxu0 0.0
        %585 = vmatpush1.msra.mxu0 0.0
        %586 = vmatprep.subr.mxu0 0.0
        %587 = vmatpush1.msra.mxu0 0.0
        %588 = vmatprep.subr.mxu0 0.0
        %589 = vmatpush1.msra.mxu0 0.0
        %590 = vmatprep.subr.mxu0 0.0
        %591 = vmatpush1.msra.mxu0 0.0
        %592 = vmatprep.subr.mxu0 0.0
        %593 = vmatpush1.msra.mxu0 0.0
        %594 = vmatprep.mubr.f32.mxu0 0.0
        %595 = vmatmul.mubr.f32.gmra.mrb[0].mxu0 %v528
        %v596 = vpop.f32.mrb[0].mxu0
        %v597 = vadd.f32 %v525, %v596
        %v598 = vpop.f32.mrb[0].mxu0
        %599 = vdwg.mxu0
        %v600 = vmul.f32 %v597, %v597
        %v601 = vmul.f32 %v597, %v600
        %v602 = vmul.f32 %v601, 0.044715
        %v603 = vadd.f32 %v597, %v602
        %v604 = vmul.f32 %v603, 0.7978846
        %v605 = vtanh.pop %v604
        %v606 = vadd.f32 %v605, 1.0
        %v607 = vmul.f32 %v606, 0.5
        %v608 = vmul.f32 %v597, %v607
        %v609 = vld [vmem:[%s7] sm:$0xff]
        %v610 = vld [vmem:[%s7 + $0x8] sm:$0xff]
        %v611 = vld [vmem:[%s7 + $0x10] sm:$0xff]
        %v612 = vld [vmem:[%s7 + $0x18] sm:$0xff]
        %v613 = vld [vmem:[%s7 + $0x20] sm:$0xff]
        %v614 = vld [vmem:[%s7 + $0x28] sm:$0xff]
        %v615 = vld [vmem:[%s7 + $0x30] sm:$0xff]
        %v616 = vld [vmem:[%s7 + $0x38] sm:$0xff]
        %v618 = vsel %vm433, %v608, 0
        %620 = vmatprep.subr.mxu0 0.0
        %621 = vmatpush1.msra.mxu0 %v609
        %622 = vmatprep.subr.mxu0 0.0
        %623 = vmatpush1.msra.mxu0 %v610
        %624 = vmatprep.subr.mxu0 0.0
        %625 = vmatpush1.msra.mxu0 %v611
        %626 = vmatprep.subr.mxu0 0.0
        %627 = vmatpush1.msra.mxu0 %v612
        %628 = vmatprep.subr.mxu0 0.0
        %629 = vmatpush1.msra.mxu0 %v613
        %630 = vmatprep.subr.mxu0 0.0
        %631 = vmatpush1.msra.mxu0 %v614
        %632 = vmatprep.subr.mxu0 0.0
        %633 = vmatpush1.msra.mxu0 %v615
        %634 = vmatprep.subr.mxu0 0.0
        %635 = vmatpush1.msra.mxu0 %v616
        %636 = vmatprep.subr.mxu0 0.0
        %637 = vmatpush1.msra.mxu0 0.0
        %638 = vmatprep.subr.mxu0 0.0
        %639 = vmatpush1.msra.mxu0 0.0
        %640 = vmatprep.subr.mxu0 0.0
        %641 = vmatpush1.msra.mxu0 0.0
        %642 = vmatprep.subr.mxu0 0.0
        %643 = vmatpush1.msra.mxu0 0.0
        %644 = vmatprep.subr.mxu0 0.0
        %645 = vmatpush1.msra.mxu0 0.0
        %646 = vmatprep.subr.mxu0 0.0
        %647 = vmatpush1.msra.mxu0 0.0
        %648 = vmatprep.subr.mxu0 0.0
        %649 = vmatpush1.msra.mxu0 0.0
        %650 = vmatprep.subr.mxu0 0.0
        %651 = vmatpush1.msra.mxu0 0.0
        %652 = vmatprep.subr.mxu0 0.0
        %653 = vmatpush1.msra.mxu0 0.0
        %654 = vmatprep.subr.mxu0 0.0
        %655 = vmatpush1.msra.mxu0 0.0
        %656 = vmatprep.subr.mxu0 0.0
        %657 = vmatpush1.msra.mxu0 0.0
        %658 = vmatprep.subr.mxu0 0.0
        %659 = vmatpush1.msra.mxu0 0.0
        %660 = vmatprep.subr.mxu0 0.0
        %661 = vmatpush1.msra.mxu0 0.0
        %662 = vmatprep.subr.mxu0 0.0
        %663 = vmatpush1.msra.mxu0 0.0
        %664 = vmatprep.subr.mxu0 0.0
        %665 = vmatpush1.msra.mxu0 0.0
        %666 = vmatprep.subr.mxu0 0.0
        %667 = vmatpush1.msra.mxu0 0.0
        %668 = vmatprep.subr.mxu0 0.0
        %669 = vmatpush1.msra.mxu0 0.0
        %670 = vmatprep.subr.mxu0 0.0
        %671 = vmatpush1.msra.mxu0 0.0
        %672 = vmatprep.subr.mxu0 0.0
        %673 = vmatpush1.msra.mxu0 0.0
        %674 = vmatprep.subr.mxu0 0.0
        %675 = vmatpush1.msra.mxu0 0.0
        %676 = vmatprep.subr.mxu0 0.0
        %677 = vmatpush1.msra.mxu0 0.0
        %678 = vmatprep.subr.mxu0 0.0
        %679 = vmatpush1.msra.mxu0 0.0
        %680 = vmatprep.subr.mxu0 0.0
        %681 = vmatpush1.msra.mxu0 0.0
        %682 = vmatprep.subr.mxu0 0.0
        %683 = vmatpush1.msra.mxu0 0.0
        %684 = vmatprep.mubr.f32.mxu0 0.0
        %685 = vmatmul.mubr.f32.gmra.mrb[0].mxu0 %v618
        %v686 = vpop.f32.mrb[0].mxu0
        %v687 = vadd.f32 0.0, %v686
        %v688 = vpop.f32.mrb[0].mxu0
        %689 = vdwg.mxu0
        %691 = vrot.lane.b32.xlu0 %v687, 32
        %v692 = vpop.permute.xlu0 %691
        %v694 = vadd.f32 %v328, %v692
        %v695 = vld [vmem:[%s8] sm:$0x1]
        %v697 = vlaneseq
        %v698 = vshrl.u32 %v697, 7
        %v699 = vsub.s32 0, %v698
        %v700 = vrot.slane %v695, %v699
        %701 = vrot.lane.b32.xlu0 %v700, 32
        %v702 = vpop.permute.xlu0 %701
        %v704 = vadd.f32 %v694, %v702
        %v705 = vsel %vm343, %v515, %v704
        %706 = vst.msk [vmem:[%s323] sm:$0xff] %vm433, %v705
        %s707 = sand.u32 %s225, 1
        %s708 = scalar_lea.sflag [#allocation3], %s707
        %s709 = sand.u32 %s225, 1
        %s710 = smul.addr %s709, 8
        %s711 = scalar_lea.vmem [#allocation2], %s710
        // Predicated region
        $region57: #{coupling_block.1} parent=55 // pred_check
          %p712 = pneg %p235
        $region58: #{coupling_block.1} parent=55 // pred_check_branch
          %714 = sbr.rel (%p712) target = $region60
        $region59: #{coupling_block.1} parent=55 // pred_region
          %s716 = ssub.s32 128, 128
          %717 = vsyncadd %s708, %s716
          %s718 = smul.addr %s23, 128
          %s719 = scalar_lea.hbm %s9, %s718
          %s721 = sshll.u32 %s711, 4
          %s722 = int_to_ptr.vmem [resolvable:$true] %s721
          %724 = dma.vmem_to_hbm [thread:$0]  %s722, 128, %s719, %s708
        $region60: #{coupling_block.1} parent=55 // pred_fallthru
          _
      $region56: #{coupling_block.1} parent=5 // pred_fallthru
        _
      %p725 = scmp.le.s32.totalorder 2, %s18
      // Predicated region
      $region61: #{coupling_block.1} parent=5 // pred_check
        %p726 = pneg %p725
      $region62: #{coupling_block.1} parent=5 // pred_check_branch
        %728 = sbr.rel (%p726) target = $region64
      $region63: #{coupling_block.1} parent=5 // pred_region
        %s729 = ssub.s32 %s18, 2
        // Predicated region
        $region65: #{coupling_block.1} parent=63 // pred_check
          %p730 = pneg %p241
        $region66: #{coupling_block.1} parent=63 // pred_check_branch
          %732 = sbr.rel (%p730) target = $region68
        $region67: #{coupling_block.1} parent=63 // pred_region
          %s733 = sand.u32 %s226, 1
          %s734 = scalar_lea.sflag [#allocation3], %s733
          %s735 = sand.u32 %s226, 1
          %s736 = smul.addr %s735, 8
          %s737 = scalar_lea.vmem [#allocation2], %s736
          %738 = dma.done %s734, 128
        $region68: #{coupling_block.1} parent=63 // pred_fallthru
          _
      $region64: #{coupling_block.1} parent=5 // pred_fallthru
        _
    $region6: #{coupling_block.1} parent=1 // loop_footer
      %s22 = sadd.s32 1, %s18
    $region7: #{coupling_block.1} parent=1 // loop_footer_branch
      %17 = sbr.rel target = $region3
    $region8: #{coupling_block.1} parent=1 // loop_exit
      _
    %739 = vsyncpa [#allocation3], 1
    %s740 = scalar_lea.sflag [#allocation3], 1
    %741 = vsyncpa %s740, 1

</llo_original>
